<compile_context>
chip_gen: v7x
topology: tpu7x:2x2x1
jax: 0.10.0
libtpu: 0.0.40
codegen_flags: <defaults>
</compile_context>

<pallas_src>
import math
from functools import partial

import jax
import jax.numpy as jnp
from jax.experimental import pallas as pl
from jax.experimental.pallas import tpu as pltpu

LN_EPS = 1e-12                      # config['ln-epsilon']
VMEM_LIMIT = 32 * 1024 * 1024       # fits default scoped VMEM on v5e/v6e/v7x


def _row_tile(n, preferred=256):
    """Row-tile size: multiple of 8 (or the full extent for small inputs)."""
    return n if n <= preferred else preferred


# ---------------------------------------------------------------------------
# Kernel 1: fused QKV projection  y = x @ [Wq|Wk|Wv] + [bq|bk|bv]
# ---------------------------------------------------------------------------
def _qkv_kernel(x_ref, w_ref, b_ref, o_ref):
    x = x_ref[...].astype(jnp.bfloat16)          # bf16 operands, f32 accumulate
    y = jnp.dot(x, w_ref[...], preferred_element_type=jnp.float32)
    o_ref[...] = y + b_ref[...]


def qkv_proj_pallas(x2, wqkv, bqkv):
    n, hd = x2.shape
    out = wqkv.shape[1]
    tm = _row_tile(n)
    return pl.pallas_call(
        _qkv_kernel,
        grid=(pl.cdiv(n, tm),),
        in_specs=[
            pl.BlockSpec((tm, hd), lambda i: (i, 0)),     # activation row tile
            pl.BlockSpec((hd, out), lambda i: (0, 0)),    # weight stays resident
            pl.BlockSpec((1, out), lambda i: (0, 0)),     # bias resident
        ],
        out_specs=pl.BlockSpec((tm, out), lambda i: (i, 0)),
        out_shape=jax.ShapeDtypeStruct((n, out), jnp.float32),
        compiler_params=pltpu.CompilerParams(
            dimension_semantics=("parallel",),
            vmem_limit_bytes=VMEM_LIMIT),
    )(x2, wqkv, bqkv)


# ---------------------------------------------------------------------------
# Kernel 2: attention core, one batch per grid step, all heads looped inside
#           (lane-dense (S, hidden) output block).
# ---------------------------------------------------------------------------
def _attn_kernel(qkv_ref, m_ref, o_ref, *, num_heads, head_dim, scale):
    hd = num_heads * head_dim
    mask = m_ref[...]                                     # (1, S) additive, f32
    # TODO(synk): attention-prob dropout omitted (identity in eval mode).
    for h in range(num_heads):                            # static unroll
        q = qkv_ref[:, h * head_dim:(h + 1) * head_dim].astype(jnp.bfloat16)
        k = qkv_ref[:, hd + h * head_dim: hd + (h + 1) * head_dim].astype(jnp.bfloat16)
        v = qkv_ref[:, 2 * hd + h * head_dim: 2 * hd + (h + 1) * head_dim].astype(jnp.bfloat16)
        # scores[s, t] = sum_d q[s, d] * k[t, d]   (f32 accumulation)
        scores = jax.lax.dot_general(
            q, k, (((1,), (1,)), ((), ())),
            preferred_element_type=jnp.float32) * scale
        scores = scores + mask                            # broadcast over rows
        smax = jnp.max(scores, axis=-1, keepdims=True)
        p = jnp.exp(scores - smax)
        denom = jnp.sum(p, axis=-1, keepdims=True)
        p = p * pl.reciprocal(denom, approx=True)         # divide on the EUP slot
        ctx = jnp.dot(p.astype(jnp.bfloat16), v,
                      preferred_element_type=jnp.float32)
        o_ref[:, h * head_dim:(h + 1) * head_dim] = ctx.astype(o_ref.dtype)


def attention_pallas(qkv3, mask3, *, num_heads, head_dim, scale):
    B, S, three_hd = qkv3.shape
    hd = num_heads * head_dim
    return pl.pallas_call(
        partial(_attn_kernel, num_heads=num_heads, head_dim=head_dim, scale=scale),
        grid=(B,),
        in_specs=[
            pl.BlockSpec((None, S, three_hd), lambda b: (b, 0, 0)),  # fused QKV of batch b
            pl.BlockSpec((None, 1, S), lambda b: (b, 0, 0)),         # key mask of batch b
        ],
        out_specs=pl.BlockSpec((None, S, hd), lambda b: (b, 0, 0)),
        out_shape=jax.ShapeDtypeStruct((B, S, hd), jnp.float32),
        compiler_params=pltpu.CompilerParams(
            dimension_semantics=("parallel",),
            vmem_limit_bytes=VMEM_LIMIT),
    )(qkv3, mask3)


# ---------------------------------------------------------------------------
# Kernel 3: output dense + residual + LayerNorm (row tiled, weight resident)
# ---------------------------------------------------------------------------
def _output_kernel(ctx_ref, res_ref, w_ref, b_ref, g_ref, beta_ref, o_ref):
    ctx = ctx_ref[...].astype(jnp.bfloat16)
    h = jnp.dot(ctx, w_ref[...], preferred_element_type=jnp.float32) + b_ref[...]
    # TODO(synk): hidden dropout omitted (identity in eval mode).
    h = h + res_ref[...]                                   # residual in f32
    mean = jnp.mean(h, axis=-1, keepdims=True)
    var = jnp.mean(jnp.square(h - mean), axis=-1, keepdims=True)
    o_ref[...] = (h - mean) * jax.lax.rsqrt(var + LN_EPS) * g_ref[...] + beta_ref[...]


def output_pallas(ctx2, res2, w, b, gamma, beta):
    n, hd = ctx2.shape
    tm = _row_tile(n)
    return pl.pallas_call(
        _output_kernel,
        grid=(pl.cdiv(n, tm),),
        in_specs=[
            pl.BlockSpec((tm, hd), lambda i: (i, 0)),     # context row tile
            pl.BlockSpec((tm, hd), lambda i: (i, 0)),     # residual row tile
            pl.BlockSpec((hd, hd), lambda i: (0, 0)),     # weight resident
            pl.BlockSpec((1, hd), lambda i: (0, 0)),      # bias
            pl.BlockSpec((1, hd), lambda i: (0, 0)),      # gamma
            pl.BlockSpec((1, hd), lambda i: (0, 0)),      # beta
        ],
        out_specs=pl.BlockSpec((tm, hd), lambda i: (i, 0)),
        out_shape=jax.ShapeDtypeStruct((n, hd), jnp.float32),
        compiler_params=pltpu.CompilerParams(
            dimension_semantics=("parallel",),
            vmem_limit_bytes=VMEM_LIMIT),
    )(ctx2, res2, w, b, gamma, beta)


# ---------------------------------------------------------------------------
# BertAttention forward
# ---------------------------------------------------------------------------
def bert_attention(params, hidden_states, attention_mask, num_heads):
    S, B, Hd = hidden_states.shape
    H = num_heads
    Dh = Hd // H
    N = B * S

    # Single layout change so every kernel sees batch-major, lane-dense blocks.
    # TODO(synk): fold this transpose into the QKV kernel's output BlockSpec.
    xb = jnp.transpose(hidden_states, (1, 0, 2))           # (B, S, Hd)
    xb2 = xb.reshape(N, Hd)

    # Fused QKV projection (x read from HBM once).
    wqkv = jnp.concatenate(
        [params["wq"], params["wk"], params["wv"]], axis=1).astype(jnp.bfloat16)
    bqkv = jnp.concatenate([params["bq"], params["bk"], params["bv"]], axis=1)
    qkv2 = qkv_proj_pallas(xb2, wqkv, bqkv)                 # (N, 3*Hd) f32
    qkv3 = qkv2.reshape(B, S, 3 * Hd)                       # free reshape

    mask3 = attention_mask.reshape(B, 1, S).astype(jnp.float32)
    ctx = attention_pallas(qkv3, mask3, num_heads=H, head_dim=Dh,
                           scale=1.0 / math.sqrt(Dh))       # (B, S, Hd)

    out2 = output_pallas(ctx.reshape(N, Hd), xb2,
                         params["wo"].astype(jnp.bfloat16), params["bo"],
                         params["gamma"], params["beta"])   # (N, Hd)

    # Back to the module's (S, B, Hd) layout.
    return out2.reshape(B, S, Hd).transpose(1, 0, 2)


# ---------------------------------------------------------------------------
# Pure-JAX f32 reference for verification
# ---------------------------------------------------------------------------
def ref_bert_attention(params, x, attention_mask, num_heads):
    S, B, Hd = x.shape
    H = num_heads
    Dh = Hd // H
    q = x @ params["wq"] + params["bq"][0]
    k = x @ params["wk"] + params["bk"][0]
    v = x @ params["wv"] + params["bv"][0]

    def to_heads(t):
        return t.reshape(S, B, H, Dh).transpose(1, 2, 0, 3)

    q4, k4, v4 = to_heads(q), to_heads(k), to_heads(v)
    scores = jnp.einsum("bhsd,bhtd->bhst", q4, k4) / math.sqrt(Dh)
    scores = scores + attention_mask                        # (B,1,1,S) broadcast
    p = jax.nn.softmax(scores, axis=-1)
    ctx = jnp.einsum("bhst,bhtd->bhsd", p, v4)
    ctx = ctx.transpose(2, 0, 1, 3).reshape(S, B, Hd)
    h = ctx @ params["wo"] + params["bo"][0] + x
    mean = jnp.mean(h, axis=-1, keepdims=True)
    var = jnp.mean((h - mean) ** 2, axis=-1, keepdims=True)
    return (h - mean) * jax.lax.rsqrt(var + LN_EPS) * params["gamma"][0] + params["beta"][0]


# ---------------------------------------------------------------------------
def init_params(key, hidden):
    ks = jax.random.split(key, 8)
    s = 0.02
    return {
        "wq": s * jax.random.normal(ks[0], (hidden, hidden), jnp.float32),
        "bq": jnp.zeros((1, hidden), jnp.float32),
        "wk": s * jax.random.normal(ks[1], (hidden, hidden), jnp.float32),
        "bk": jnp.zeros((1, hidden), jnp.float32),
        "wv": s * jax.random.normal(ks[2], (hidden, hidden), jnp.float32),
        "bv": jnp.zeros((1, hidden), jnp.float32),
        "wo": s * jax.random.normal(ks[3], (hidden, hidden), jnp.float32),
        "bo": 0.01 * jax.random.normal(ks[4], (1, hidden), jnp.float32),
        "gamma": jnp.ones((1, hidden), jnp.float32),
        "beta": jnp.zeros((1, hidden), jnp.float32),
    }


if __name__ == "__main__":
    SEQ, BATCH, HIDDEN, HEADS = 16, 2, 128, 2   # Dh=64, hidden lane-dense (128)

    key = jax.random.PRNGKey(0)
    kx, km, kp = jax.random.split(key, 3)

    hidden_states = jax.random.normal(kx, (SEQ, BATCH, HIDDEN), jnp.float32)
    # additive attention mask: 0 where attended, -10000 where masked
    keep = (jax.random.uniform(km, (BATCH, 1, 1, SEQ)) > 0.2).astype(jnp.float32)
    attention_mask = (1.0 - keep) * -10000.0

    params = init_params(kp, HIDDEN)

    fwd = jax.jit(partial(bert_attention, num_heads=HEADS))
    out = fwd(params, hidden_states, attention_mask)
    out = jax.block_until_ready(out)

    ref = ref_bert_attention(params, hidden_states, attention_mask, HEADS)
    assert out.shape == (SEQ, BATCH, HIDDEN)
    # bf16 MXU operands + approx reciprocal vs f32 reference -> relaxed tolerance
    assert jnp.allclose(out, ref, atol=2e-2, rtol=2e-2), "mismatch vs reference"

    print("KERNEL_OK")
</pallas_src>

<mosaic_0001>
module attributes {stable_mosaic.version = 11 : i64} {
  func.func @_qkv_kernel(%arg0: i32, %arg1: memref<32x128xf32, #tpu.memory_space<vmem>>, %arg2: memref<128x384xbf16, #tpu.memory_space<vmem>>, %arg3: memref<1x384xf32, #tpu.memory_space<vmem>>, %arg4: memref<32x384xf32, #tpu.memory_space<vmem>>) attributes {dimension_semantics = [#tpu.dimension_semantics<parallel>], iteration_bounds = array<i64: 1>, scalar_prefetch = 0 : i64, scratch_operands = 0 : i64, tpu.core_type = #tpu.core_type<tc>, window_params = [{transform_indices = @transform_0, window_bounds = array<i64: 32, 128>}, {pipeline_mode = #tpu.pipeline_mode<synchronous>, transform_indices = @transform_1, window_bounds = array<i64: 128, 384>}, {pipeline_mode = #tpu.pipeline_mode<synchronous>, transform_indices = @transform_2, window_bounds = array<i64: 1, 384>}, {transform_indices = @transform_3, window_bounds = array<i64: 32, 384>}]} {
    %c0 = arith.constant 0 : index
    %c0_0 = arith.constant 0 : index
    %0 = vector.load %arg1[%c0, %c0_0] : memref<32x128xf32, #tpu.memory_space<vmem>>, vector<32x128xf32>
    %1 = arith.truncf %0 : vector<32x128xf32> to vector<32x128xbf16>
    %c0_1 = arith.constant 0 : index
    %c0_2 = arith.constant 0 : index
    %2 = vector.load %arg2[%c0_1, %c0_2] : memref<128x384xbf16, #tpu.memory_space<vmem>>, vector<128x384xbf16>
    %cst = arith.constant dense<0.000000e+00> : vector<32x384xf32>
    %3 = tpu.matmul %1, %2, %cst {dimension_numbers = #tpu.dot_dimension_numbers<[1], [0], [0], [1], [0, 0, 1, 1], [], []>} : vector<32x128xbf16>, vector<128x384xbf16>, vector<32x384xf32> -> vector<32x384xf32>
    %c0_3 = arith.constant 0 : index
    %c0_4 = arith.constant 0 : index
    %4 = vector.load %arg3[%c0_3, %c0_4] : memref<1x384xf32, #tpu.memory_space<vmem>>, vector<1x384xf32>
    %5 = vector.broadcast %4 : vector<1x384xf32> to vector<32x384xf32>
    %6 = arith.addf %3, %5 : vector<32x384xf32>
    %c0_5 = arith.constant 0 : index
    %c0_6 = arith.constant 0 : index
    %7 = vector.load %arg4[%c0_5, %c0_6] : memref<32x384xf32, #tpu.memory_space<vmem>>, vector<32x384xf32>
    tpu.vector_store %arg4[%c0_5, %c0_6], %6 {strides = array<i32>} : memref<32x384xf32, #tpu.memory_space<vmem>>, vector<32x384xf32>,
    return
  }
  func.func @transform_0(%arg0: i32) -> (i32, i32) {
    %c0_i32 = arith.constant 0 : i32
    %c0_i32_0 = arith.constant 0 : i32
    return %arg0, %c0_i32 : i32, i32
  }
  func.func @transform_1(%arg0: i32) -> (i32, i32) {
    %c0_i32 = arith.constant 0 : i32
    %c0_i32_0 = arith.constant 0 : i32
    %c0_i32_1 = arith.constant 0 : i32
    return %c0_i32, %c0_i32_0 : i32, i32
  }
  func.func @transform_2(%arg0: i32) -> (i32, i32) {
    %c0_i32 = arith.constant 0 : i32
    %c0_i32_0 = arith.constant 0 : i32
    %c0_i32_1 = arith.constant 0 : i32
    return %c0_i32, %c0_i32_0 : i32, i32
  }
  func.func @transform_3(%arg0: i32) -> (i32, i32) {
    %c0_i32 = arith.constant 0 : i32
    %c0_i32_0 = arith.constant 0 : i32
    return %arg0, %c0_i32 : i32, i32
  }
}

module attributes {stable_mosaic.version = 11 : i64} {
  func.func @_attn_kernel(%arg0: i32, %arg1: memref<1x16x384xf32, #tpu.memory_space<vmem>>, %arg2: memref<1x1x16xf32, #tpu.memory_space<vmem>>, %arg3: memref<1x16x128xf32, #tpu.memory_space<vmem>>) attributes {dimension_semantics = [#tpu.dimension_semantics<parallel>], iteration_bounds = array<i64: 2>, scalar_prefetch = 0 : i64, scratch_operands = 0 : i64, tpu.core_type = #tpu.core_type<tc>, window_params = [{transform_indices = @transform_0, window_bounds = array<i64: 1, 16, 384>}, {transform_indices = @transform_1, window_bounds = array<i64: 1, 1, 16>}, {transform_indices = @transform_2, window_bounds = array<i64: 1, 16, 128>}]} {
    %c0 = arith.constant 0 : index
    %c0_0 = arith.constant 0 : index
    %c0_1 = arith.constant 0 : index
    %0 = vector.load %arg2[%c0, %c0_0, %c0_1] : memref<1x1x16xf32, #tpu.memory_space<vmem>>, vector<1x1x16xf32>
    %1 = vector.shape_cast %0 : vector<1x1x16xf32> to vector<1x16xf32>
    %c0_2 = arith.constant 0 : index
    %c0_3 = arith.constant 0 : index
    %c0_4 = arith.constant 0 : index
    %2 = vector.load %arg1[%c0_2, %c0_3, %c0_4] : memref<1x16x384xf32, #tpu.memory_space<vmem>>, vector<1x16x64xf32>
    %3 = vector.shape_cast %2 : vector<1x16x64xf32> to vector<16x64xf32>
    %4 = arith.truncf %3 : vector<16x64xf32> to vector<16x64xbf16>
    %c0_5 = arith.constant 0 : index
    %c0_6 = arith.constant 0 : index
    %c128 = arith.constant 128 : index
    %5 = vector.load %arg1[%c0_5, %c0_6, %c128] : memref<1x16x384xf32, #tpu.memory_space<vmem>>, vector<1x16x64xf32>
    %6 = vector.shape_cast %5 : vector<1x16x64xf32> to vector<16x64xf32>
    %7 = arith.truncf %6 : vector<16x64xf32> to vector<16x64xbf16>
    %c0_7 = arith.constant 0 : index
    %c0_8 = arith.constant 0 : index
    %c256 = arith.constant 256 : index
    %8 = vector.load %arg1[%c0_7, %c0_8, %c256] : memref<1x16x384xf32, #tpu.memory_space<vmem>>, vector<1x16x64xf32>
    %9 = vector.shape_cast %8 : vector<1x16x64xf32> to vector<16x64xf32>
    %10 = arith.truncf %9 : vector<16x64xf32> to vector<16x64xbf16>
    %cst = arith.constant dense<0.000000e+00> : vector<16x16xf32>
    %11 = tpu.matmul %4, %7, %cst {dimension_numbers = #tpu.dot_dimension_numbers<[1], [1], [0], [0], [0, 0, 1, 0], [], []>} : vector<16x64xbf16>, vector<16x64xbf16>, vector<16x16xf32> -> vector<16x16xf32>
    %cst_9 = arith.constant 1.250000e-01 : f32
    %12 = vector.broadcast %cst_9 : f32 to vector<16x16xf32>
    %13 = arith.mulf %11, %12 : vector<16x16xf32>
    %14 = vector.broadcast %1 : vector<1x16xf32> to vector<16x16xf32>
    %15 = arith.addf %13, %14 : vector<16x16xf32>
    %cst_10 = arith.constant dense<0xFF800000> : vector<16xf32>
    %16 = vector.multi_reduction <maximumf>, %15, %cst_10 [1] : vector<16x16xf32> to vector<16xf32>
    %17 = vector.shape_cast %16 : vector<16xf32> to vector<16x1xf32>
    %18 = vector.broadcast %17 : vector<16x1xf32> to vector<16x16xf32>
    %19 = arith.subf %15, %18 : vector<16x16xf32>
    %20 = math.exp %19 : vector<16x16xf32>
    %cst_11 = arith.constant dense<0.000000e+00> : vector<16xf32>
    %21 = vector.multi_reduction <add>, %20, %cst_11 [1] : vector<16x16xf32> to vector<16xf32>
    %22 = vector.shape_cast %21 : vector<16xf32> to vector<16x1xf32>
    %23 = tpu.reciprocal %22 {approx = true} : vector<16x1xf32> -> vector<16x1xf32>
    %24 = vector.broadcast %23 : vector<16x1xf32> to vector<16x16xf32>
    %25 = arith.mulf %20, %24 : vector<16x16xf32>
    %26 = arith.truncf %25 : vector<16x16xf32> to vector<16x16xbf16>
    %cst_12 = arith.constant dense<0.000000e+00> : vector<16x64xf32>
    %27 = tpu.matmul %26, %10, %cst_12 {dimension_numbers = #tpu.dot_dimension_numbers<[1], [0], [0], [1], [0, 0, 1, 1], [], []>} : vector<16x16xbf16>, vector<16x64xbf16>, vector<16x64xf32> -> vector<16x64xf32>
    %c0_13 = arith.constant 0 : index
    %c0_14 = arith.constant 0 : index
    %c0_15 = arith.constant 0 : index
    %28 = vector.load %arg3[%c0_13, %c0_14, %c0_15] : memref<1x16x128xf32, #tpu.memory_space<vmem>>, vector<1x16x64xf32>
    %29 = vector.shape_cast %28 : vector<1x16x64xf32> to vector<16x64xf32>
    %30 = vector.shape_cast %27 : vector<16x64xf32> to vector<1x16x64xf32>
    tpu.vector_store %arg3[%c0_13, %c0_14, %c0_15], %30 {strides = array<i32>} : memref<1x16x128xf32, #tpu.memory_space<vmem>>, vector<1x16x64xf32>,
    %c0_16 = arith.constant 0 : index
    %c0_17 = arith.constant 0 : index
    %c64 = arith.constant 64 : index
    %31 = vector.load %arg1[%c0_16, %c0_17, %c64] : memref<1x16x384xf32, #tpu.memory_space<vmem>>, vector<1x16x64xf32>
    %32 = vector.shape_cast %31 : vector<1x16x64xf32> to vector<16x64xf32>
    %33 = arith.truncf %32 : vector<16x64xf32> to vector<16x64xbf16>
    %c0_18 = arith.constant 0 : index
    %c0_19 = arith.constant 0 : index
    %c192 = arith.constant 192 : index
    %34 = vector.load %arg1[%c0_18, %c0_19, %c192] : memref<1x16x384xf32, #tpu.memory_space<vmem>>, vector<1x16x64xf32>
    %35 = vector.shape_cast %34 : vector<1x16x64xf32> to vector<16x64xf32>
    %36 = arith.truncf %35 : vector<16x64xf32> to vector<16x64xbf16>
    %c0_20 = arith.constant 0 : index
    %c0_21 = arith.constant 0 : index
    %c320 = arith.constant 320 : index
    %37 = vector.load %arg1[%c0_20, %c0_21, %c320] : memref<1x16x384xf32, #tpu.memory_space<vmem>>, vector<1x16x64xf32>
    %38 = vector.shape_cast %37 : vector<1x16x64xf32> to vector<16x64xf32>
    %39 = arith.truncf %38 : vector<16x64xf32> to vector<16x64xbf16>
    %cst_22 = arith.constant dense<0.000000e+00> : vector<16x16xf32>
    %40 = tpu.matmul %33, %36, %cst_22 {dimension_numbers = #tpu.dot_dimension_numbers<[1], [1], [0], [0], [0, 0, 1, 0], [], []>} : vector<16x64xbf16>, vector<16x64xbf16>, vector<16x16xf32> -> vector<16x16xf32>
    %cst_23 = arith.constant 1.250000e-01 : f32
    %41 = vector.broadcast %cst_23 : f32 to vector<16x16xf32>
    %42 = arith.mulf %40, %41 : vector<16x16xf32>
    %43 = vector.broadcast %1 : vector<1x16xf32> to vector<16x16xf32>
    %44 = arith.addf %42, %43 : vector<16x16xf32>
    %cst_24 = arith.constant dense<0xFF800000> : vector<16xf32>
    %45 = vector.multi_reduction <maximumf>, %44, %cst_24 [1] : vector<16x16xf32> to vector<16xf32>
    %46 = vector.shape_cast %45 : vector<16xf32> to vector<16x1xf32>
    %47 = vector.broadcast %46 : vector<16x1xf32> to vector<16x16xf32>
    %48 = arith.subf %44, %47 : vector<16x16xf32>
    %49 = math.exp %48 : vector<16x16xf32>
    %cst_25 = arith.constant dense<0.000000e+00> : vector<16xf32>
    %50 = vector.multi_reduction <add>, %49, %cst_25 [1] : vector<16x16xf32> to vector<16xf32>
    %51 = vector.shape_cast %50 : vector<16xf32> to vector<16x1xf32>
    %52 = tpu.reciprocal %51 {approx = true} : vector<16x1xf32> -> vector<16x1xf32>
    %53 = vector.broadcast %52 : vector<16x1xf32> to vector<16x16xf32>
    %54 = arith.mulf %49, %53 : vector<16x16xf32>
    %55 = arith.truncf %54 : vector<16x16xf32> to vector<16x16xbf16>
    %cst_26 = arith.constant dense<0.000000e+00> : vector<16x64xf32>
    %56 = tpu.matmul %55, %39, %cst_26 {dimension_numbers = #tpu.dot_dimension_numbers<[1], [0], [0], [1], [0, 0, 1, 1], [], []>} : vector<16x16xbf16>, vector<16x64xbf16>, vector<16x64xf32> -> vector<16x64xf32>
    %c0_27 = arith.constant 0 : index
    %c0_28 = arith.constant 0 : index
    %c64_29 = arith.constant 64 : index
    %57 = vector.load %arg3[%c0_27, %c0_28, %c64_29] : memref<1x16x128xf32, #tpu.memory_space<vmem>>, vector<1x16x64xf32>
    %58 = vector.shape_cast %57 : vector<1x16x64xf32> to vector<16x64xf32>
    %59 = vector.shape_cast %56 : vector<16x64xf32> to vector<1x16x64xf32>
    tpu.vector_store %arg3[%c0_27, %c0_28, %c64_29], %59 {strides = array<i32>} : memref<1x16x128xf32, #tpu.memory_space<vmem>>, vector<1x16x64xf32>,
    return
  }
  func.func @transform_0(%arg0: i32) -> (i32, i32, i32) {
    %c0_i32 = arith.constant 0 : i32
    %c0_i32_0 = arith.constant 0 : i32
    %c0_i32_1 = arith.constant 0 : i32
    return %arg0, %c0_i32, %c0_i32_0 : i32, i32, i32
  }
  func.func @transform_1(%arg0: i32) -> (i32, i32, i32) {
    %c0_i32 = arith.constant 0 : i32
    %c0_i32_0 = arith.constant 0 : i32
    %c0_i32_1 = arith.constant 0 : i32
    return %arg0, %c0_i32, %c0_i32_0 : i32, i32, i32
  }
  func.func @transform_2(%arg0: i32) -> (i32, i32, i32) {
    %c0_i32 = arith.constant 0 : i32
    %c0_i32_0 = arith.constant 0 : i32
    %c0_i32_1 = arith.constant 0 : i32
    return %arg0, %c0_i32, %c0_i32_0 : i32, i32, i32
  }
}

module attributes {stable_mosaic.version = 11 : i64} {
  func.func @_output_kernel(%arg0: i32, %arg1: memref<32x128xf32, #tpu.memory_space<vmem>>, %arg2: memref<32x128xf32, #tpu.memory_space<vmem>>, %arg3: memref<128x128xbf16, #tpu.memory_space<vmem>>, %arg4: memref<1x128xf32, #tpu.memory_space<vmem>>, %arg5: memref<1x128xf32, #tpu.memory_space<vmem>>, %arg6: memref<1x128xf32, #tpu.memory_space<vmem>>, %arg7: memref<32x128xf32, #tpu.memory_space<vmem>>) attributes {dimension_semantics = [#tpu.dimension_semantics<parallel>], iteration_bounds = array<i64: 1>, scalar_prefetch = 0 : i64, scratch_operands = 0 : i64, tpu.core_type = #tpu.core_type<tc>, window_params = [{transform_indices = @transform_0, window_bounds = array<i64: 32, 128>}, {transform_indices = @transform_1, window_bounds = array<i64: 32, 128>}, {pipeline_mode = #tpu.pipeline_mode<synchronous>, transform_indices = @transform_2, window_bounds = array<i64: 128, 128>}, {pipeline_mode = #tpu.pipeline_mode<synchronous>, transform_indices = @transform_3, window_bounds = array<i64: 1, 128>}, {pipeline_mode = #tpu.pipeline_mode<synchronous>, transform_indices = @transform_4, window_bounds = array<i64: 1, 128>}, {pipeline_mode = #tpu.pipeline_mode<synchronous>, transform_indices = @transform_5, window_bounds = array<i64: 1, 128>}, {transform_indices = @transform_6, window_bounds = array<i64: 32, 128>}]} {
    %c0 = arith.constant 0 : index
    %c0_0 = arith.constant 0 : index
    %0 = vector.load %arg1[%c0, %c0_0] : memref<32x128xf32, #tpu.memory_space<vmem>>, vector<32x128xf32>
    %1 = arith.truncf %0 : vector<32x128xf32> to vector<32x128xbf16>
    %c0_1 = arith.constant 0 : index
    %c0_2 = arith.constant 0 : index
    %2 = vector.load %arg3[%c0_1, %c0_2] : memref<128x128xbf16, #tpu.memory_space<vmem>>, vector<128x128xbf16>
    %cst = arith.constant dense<0.000000e+00> : vector<32x128xf32>
    %3 = tpu.matmul %1, %2, %cst {dimension_numbers = #tpu.dot_dimension_numbers<[1], [0], [0], [1], [0, 0, 1, 1], [], []>} : vector<32x128xbf16>, vector<128x128xbf16>, vector<32x128xf32> -> vector<32x128xf32>
    %c0_3 = arith.constant 0 : index
    %c0_4 = arith.constant 0 : index
    %4 = vector.load %arg4[%c0_3, %c0_4] : memref<1x128xf32, #tpu.memory_space<vmem>>, vector<1x128xf32>
    %5 = vector.broadcast %4 : vector<1x128xf32> to vector<32x128xf32>
    %6 = arith.addf %3, %5 : vector<32x128xf32>
    %c0_5 = arith.constant 0 : index
    %c0_6 = arith.constant 0 : index
    %7 = vector.load %arg2[%c0_5, %c0_6] : memref<32x128xf32, #tpu.memory_space<vmem>>, vector<32x128xf32>
    %8 = arith.addf %6, %7 : vector<32x128xf32>
    %cst_7 = arith.constant dense<0.000000e+00> : vector<32xf32>
    %9 = vector.multi_reduction <add>, %8, %cst_7 [1] : vector<32x128xf32> to vector<32xf32>
    %10 = vector.shape_cast %9 : vector<32xf32> to vector<32x1xf32>
    %cst_8 = arith.constant 1.280000e+02 : f32
    %11 = vector.broadcast %cst_8 : f32 to vector<32x1xf32>
    %12 = arith.divf %10, %11 : vector<32x1xf32>
    %13 = vector.broadcast %12 : vector<32x1xf32> to vector<32x128xf32>
    %14 = arith.subf %8, %13 : vector<32x128xf32>
    %15 = arith.mulf %14, %14 : vector<32x128xf32>
    %cst_9 = arith.constant dense<0.000000e+00> : vector<32xf32>
    %16 = vector.multi_reduction <add>, %15, %cst_9 [1] : vector<32x128xf32> to vector<32xf32>
    %17 = vector.shape_cast %16 : vector<32xf32> to vector<32x1xf32>
    %cst_10 = arith.constant 1.280000e+02 : f32
    %18 = vector.broadcast %cst_10 : f32 to vector<32x1xf32>
    %19 = arith.divf %17, %18 : vector<32x1xf32>
    %20 = vector.broadcast %12 : vector<32x1xf32> to vector<32x128xf32>
    %21 = arith.subf %8, %20 : vector<32x128xf32>
    %cst_11 = arith.constant 9.99999996E-13 : f32
    %22 = vector.broadcast %cst_11 : f32 to vector<32x1xf32>
    %23 = arith.addf %19, %22 : vector<32x1xf32>
    %24 = math.rsqrt %23 : vector<32x1xf32>
    %25 = vector.broadcast %24 : vector<32x1xf32> to vector<32x128xf32>
    %26 = arith.mulf %21, %25 : vector<32x128xf32>
    %c0_12 = arith.constant 0 : index
    %c0_13 = arith.constant 0 : index
    %27 = vector.load %arg5[%c0_12, %c0_13] : memref<1x128xf32, #tpu.memory_space<vmem>>, vector<1x128xf32>
    %28 = vector.broadcast %27 : vector<1x128xf32> to vector<32x128xf32>
    %29 = arith.mulf %26, %28 : vector<32x128xf32>
    %c0_14 = arith.constant 0 : index
    %c0_15 = arith.constant 0 : index
    %30 = vector.load %arg6[%c0_14, %c0_15] : memref<1x128xf32, #tpu.memory_space<vmem>>, vector<1x128xf32>
    %31 = vector.broadcast %30 : vector<1x128xf32> to vector<32x128xf32>
    %32 = arith.addf %29, %31 : vector<32x128xf32>
    %c0_16 = arith.constant 0 : index
    %c0_17 = arith.constant 0 : index
    %33 = vector.load %arg7[%c0_16, %c0_17] : memref<32x128xf32, #tpu.memory_space<vmem>>, vector<32x128xf32>
    tpu.vector_store %arg7[%c0_16, %c0_17], %32 {strides = array<i32>} : memref<32x128xf32, #tpu.memory_space<vmem>>, vector<32x128xf32>,
    return
  }
  func.func @transform_0(%arg0: i32) -> (i32, i32) {
    %c0_i32 = arith.constant 0 : i32
    %c0_i32_0 = arith.constant 0 : i32
    return %arg0, %c0_i32 : i32, i32
  }
  func.func @transform_1(%arg0: i32) -> (i32, i32) {
    %c0_i32 = arith.constant 0 : i32
    %c0_i32_0 = arith.constant 0 : i32
    return %arg0, %c0_i32 : i32, i32
  }
  func.func @transform_2(%arg0: i32) -> (i32, i32) {
    %c0_i32 = arith.constant 0 : i32
    %c0_i32_0 = arith.constant 0 : i32
    %c0_i32_1 = arith.constant 0 : i32
    return %c0_i32, %c0_i32_0 : i32, i32
  }
  func.func @transform_3(%arg0: i32) -> (i32, i32) {
    %c0_i32 = arith.constant 0 : i32
    %c0_i32_0 = arith.constant 0 : i32
    %c0_i32_1 = arith.constant 0 : i32
    return %c0_i32, %c0_i32_0 : i32, i32
  }
  func.func @transform_4(%arg0: i32) -> (i32, i32) {
    %c0_i32 = arith.constant 0 : i32
    %c0_i32_0 = arith.constant 0 : i32
    %c0_i32_1 = arith.constant 0 : i32
    return %c0_i32, %c0_i32_0 : i32, i32
  }
  func.func @transform_5(%arg0: i32) -> (i32, i32) {
    %c0_i32 = arith.constant 0 : i32
    %c0_i32_0 = arith.constant 0 : i32
    %c0_i32_1 = arith.constant 0 : i32
    return %c0_i32, %c0_i32_0 : i32, i32
  }
  func.func @transform_6(%arg0: i32) -> (i32, i32) {
    %c0_i32 = arith.constant 0 : i32
    %c0_i32_0 = arith.constant 0 : i32
    return %arg0, %c0_i32 : i32, i32
  }
}

</mosaic_0001>

<llo_original>
// kernel: bert_attention.5
$region0: #{bert_attention.5}
  #allocation0 [shape = 'u32[]', space=smem, size = 0x4, offset = 0x4, fixed_abs, tag = 'smem constant byte address 0x4 - core index']
  #allocation1 [shape = 'u32[144,128]{1,0:T(1,128)}', space=vmem, size = 0x12000, scoped, tag = 'internal scratch']
  %s0 = inlined_call_operand.vmem [shape: f32[32,128], index: 0, kind: input, shape index: {}]
  %s1 = inlined_call_operand.vmem [shape: f32[32,128], index: 1, kind: input, shape index: {}]
  %s2 = inlined_call_operand.vmem [shape: bf16[128,128], index: 2, kind: input, shape index: {}]
  %s3 = inlined_call_operand.vmem [shape: f32[1,128], index: 3, kind: input, shape index: {}]
  %s4 = inlined_call_operand.vmem [shape: f32[1,128], index: 4, kind: input, shape index: {}]
  %s5 = inlined_call_operand.vmem [shape: f32[1,128], index: 5, kind: input, shape index: {}]
  %s6 = inlined_call_operand.vmem [shape: f32[32,128], index: 6, kind: output, shape index: {}]
  %s7 = sld [smem:[#allocation0]]
  $region34: #{bert_attention.5} parent=0
    _
  %s9 = ssub.s32 1, %s7
  %s10 = scalar_select 0, %s9, %s7
  // Predicated region
  $region2: #{bert_attention.5} parent=0 // pred_check
    _
  $region3: #{bert_attention.5} parent=0 // pred_check_branch
    %12 = sbr.rel (0) target = $region5
  $region4: #{bert_attention.5} parent=0 // pred_region
    _
  $region5: #{bert_attention.5} parent=0 // pred_fallthru
    _
  // Predicated region
  $region6: #{bert_attention.5} parent=0 // pred_check
    _
  $region7: #{bert_attention.5} parent=0 // pred_check_branch
    %14 = sbr.rel (0) target = $region9
  $region8: #{bert_attention.5} parent=0 // pred_region
    _
  $region9: #{bert_attention.5} parent=0 // pred_fallthru
    _
  // Predicated region
  $region10: #{bert_attention.5} parent=0 // pred_check
    _
  $region11: #{bert_attention.5} parent=0 // pred_check_branch
    %16 = sbr.rel (0) target = $region13
  $region12: #{bert_attention.5} parent=0 // pred_region
    _
  $region13: #{bert_attention.5} parent=0 // pred_fallthru
    _
  // Predicated region
  $region14: #{bert_attention.5} parent=0 // pred_check
    _
  $region15: #{bert_attention.5} parent=0 // pred_check_branch
    %18 = sbr.rel (0) target = $region17
  $region16: #{bert_attention.5} parent=0 // pred_region
    _
  $region17: #{bert_attention.5} parent=0 // pred_fallthru
    _
  // Predicated region
  $region18: #{bert_attention.5} parent=0 // pred_check
    _
  $region19: #{bert_attention.5} parent=0 // pred_check_branch
    %20 = sbr.rel (0) target = $region21
  $region20: #{bert_attention.5} parent=0 // pred_region
    _
  $region21: #{bert_attention.5} parent=0 // pred_fallthru
    _
  // Predicated region
  $region22: #{bert_attention.5} parent=0 // pred_check
    _
  $region23: #{bert_attention.5} parent=0 // pred_check_branch
    %22 = sbr.rel (0) target = $region25
  $region24: #{bert_attention.5} parent=0 // pred_region
    _
  $region25: #{bert_attention.5} parent=0 // pred_fallthru
    _
  %v24 = vld [vmem:[%s0] sm:$0xff]
  %v25 = vld [vmem:[%s0 + $0x8] sm:$0xff]
  %v26 = vld [vmem:[%s0 + $0x10] sm:$0xff]
  %v27 = vld [vmem:[%s0 + $0x18] sm:$0xff]
  %v28 = vpack.c.bf16 %v25, %v24
  %v29 = vpack.c.bf16 %v27, %v26
  %v30 = vld [vmem:[%s2] sm:$0xf]
  %v31 = vld [vmem:[%s2 + $0x4] sm:$0xf]
  %v32 = vld [vmem:[%s2 + $0x8] sm:$0xf]
  %v33 = vld [vmem:[%s2 + $0xc] sm:$0xf]
  %v34 = vld [vmem:[%s2 + $0x10] sm:$0xf]
  %v35 = vld [vmem:[%s2 + $0x14] sm:$0xf]
  %v36 = vld [vmem:[%s2 + $0x18] sm:$0xf]
  %v37 = vld [vmem:[%s2 + $0x1c] sm:$0xf]
  %v38 = vld [vmem:[%s2 + $0x20] sm:$0xf]
  %v39 = vld [vmem:[%s2 + $0x24] sm:$0xf]
  %v40 = vld [vmem:[%s2 + $0x28] sm:$0xf]
  %v41 = vld [vmem:[%s2 + $0x2c] sm:$0xf]
  %v42 = vld [vmem:[%s2 + $0x30] sm:$0xf]
  %v43 = vld [vmem:[%s2 + $0x34] sm:$0xf]
  %v44 = vld [vmem:[%s2 + $0x38] sm:$0xf]
  %v45 = vld [vmem:[%s2 + $0x3c] sm:$0xf]
  %v46 = vld [vmem:[%s3] sm:$0x1]
  %v48 = vlaneseq
  %v49 = vshrl.u32 %v48, 7
  %v50 = vsub.s32 0, %v49
  %v51 = vrot.slane %v46, %v50
  %v69 = vunpack.c.l.b16 %v30
  %v70 = vunpack.c.l.b16 %v31
  %v71 = vunpack.c.l.b16 %v32
  %v72 = vunpack.c.l.b16 %v33
  %v73 = vunpack.c.l.b16 %v34
  %v74 = vunpack.c.l.b16 %v35
  %v75 = vunpack.c.l.b16 %v36
  %v76 = vunpack.c.l.b16 %v37
  %v77 = vunpack.c.l.b16 %v38
  %v78 = vunpack.c.l.b16 %v39
  %v79 = vunpack.c.l.b16 %v40
  %v80 = vunpack.c.l.b16 %v41
  %v81 = vunpack.c.l.b16 %v42
  %v82 = vunpack.c.l.b16 %v43
  %v83 = vunpack.c.l.b16 %v44
  %v84 = vunpack.c.l.b16 %v45
  %v85 = vpack.c.b16 %v70, %v69
  %v86 = vpack.c.b16 %v72, %v71
  %v87 = vpack.c.b16 %v74, %v73
  %v88 = vpack.c.b16 %v76, %v75
  %v89 = vpack.c.b16 %v78, %v77
  %v90 = vpack.c.b16 %v80, %v79
  %v91 = vpack.c.b16 %v82, %v81
  %v92 = vpack.c.b16 %v84, %v83
  %101 = vmatprep.subr.bf16.mxu0 0
  %102 = vmatpush1.bf16.msra.mxu0 %v85
  %103 = vmatprep.subr.bf16.mxu0 0
  %104 = vmatpush1.bf16.msra.mxu0 %v86
  %105 = vmatprep.subr.bf16.mxu0 0
  %106 = vmatpush1.bf16.msra.mxu0 %v87
  %107 = vmatprep.subr.bf16.mxu0 0
  %108 = vmatpush1.bf16.msra.mxu0 %v88
  %109 = vmatprep.subr.bf16.mxu0 0
  %110 = vmatpush1.bf16.msra.mxu0 %v89
  %111 = vmatprep.subr.bf16.mxu0 0
  %112 = vmatpush1.bf16.msra.mxu0 %v90
  %113 = vmatprep.subr.bf16.mxu0 0
  %114 = vmatpush1.bf16.msra.mxu0 %v91
  %115 = vmatprep.subr.bf16.mxu0 0
  %116 = vmatpush1.bf16.msra.mxu0 %v92
  %117 = vmatprep.subr.bf16.mxu0 0
  %118 = vmatpush1.bf16.msra.mxu0 0
  %119 = vmatprep.subr.bf16.mxu0 0
  %120 = vmatpush1.bf16.msra.mxu0 0
  %121 = vmatprep.subr.bf16.mxu0 0
  %122 = vmatpush1.bf16.msra.mxu0 0
  %123 = vmatprep.subr.bf16.mxu0 0
  %124 = vmatpush1.bf16.msra.mxu0 0
  %125 = vmatprep.subr.bf16.mxu0 0
  %126 = vmatpush1.bf16.msra.mxu0 0
  %127 = vmatprep.subr.bf16.mxu0 0
  %128 = vmatpush1.bf16.msra.mxu0 0
  %129 = vmatprep.subr.bf16.mxu0 0
  %130 = vmatpush1.bf16.msra.mxu0 0
  %131 = vmatprep.subr.bf16.mxu0 0
  %132 = vmatpush1.bf16.msra.mxu0 0
  %133 = vmatprep.mubr.bf16.mxu0 0
  %134 = vmatmul.mubr.bf16.gmra.mrb[0].mxu0 %v28
  %v135 = vpop.f32.mrb[0].mxu0
  %v136 = vadd.f32 %v51, %v135
  %v137 = vpop.f32.mrb[0].mxu0
  %v138 = vpop.f32.mrb[0].mxu0
  %v139 = vadd.f32 %v51, %v138
  %v140 = vpop.f32.mrb[0].mxu0
  %141 = vmatprep.mubr.bf16.mxu0 0
  %142 = vmatmul.mubr.bf16.gmra.mrb[0].mxu0 %v29
  %v143 = vpop.f32.mrb[0].mxu0
  %v144 = vadd.f32 %v51, %v143
  %v145 = vpop.f32.mrb[0].mxu0
  %v146 = vpop.f32.mrb[0].mxu0
  %v147 = vadd.f32 %v51, %v146
  %v148 = vpop.f32.mrb[0].mxu0
  %149 = vdwg.mxu0
  %v150 = vld [vmem:[%s1] sm:$0xff]
  %v151 = vld [vmem:[%s1 + $0x8] sm:$0xff]
  %v152 = vld [vmem:[%s1 + $0x10] sm:$0xff]
  %v153 = vld [vmem:[%s1 + $0x18] sm:$0xff]
  %v154 = vadd.f32 %v136, %v150
  %v155 = vadd.f32 %v139, %v151
  %v156 = vadd.f32 %v144, %v152
  %v157 = vadd.f32 %v147, %v153
  %158 = vadd.xlane.f32.xlu0 %v154
  %v159 = vpop.xlane.xlu0 %158
  %160 = vadd.xlane.f32.xlu0 %v155
  %v161 = vpop.xlane.xlu0 %160
  %162 = vadd.xlane.f32.xlu0 %v156
  %v163 = vpop.xlane.xlu0 %162
  %164 = vadd.xlane.f32.xlu0 %v157
  %v165 = vpop.xlane.xlu0 %164
  %v166 = vrcp.pop 128.0
  %v167 = vmul.f32 %v159, %v166
  %v168 = vmul.f32 %v161, %v166
  %v169 = vmul.f32 %v163, %v166
  %v170 = vmul.f32 %v165, %v166
  %v171 = vsub.f32 %v154, %v167
  %v172 = vsub.f32 %v155, %v168
  %v173 = vsub.f32 %v156, %v169
  %v174 = vsub.f32 %v157, %v170
  %v175 = vmul.f32 %v171, %v171
  %v176 = vmul.f32 %v172, %v172
  %v177 = vmul.f32 %v173, %v173
  %v178 = vmul.f32 %v174, %v174
  %179 = vadd.xlane.f32.xlu0 %v175
  %v180 = vpop.xlane.xlu0 %179
  %181 = vadd.xlane.f32.xlu0 %v176
  %v182 = vpop.xlane.xlu0 %181
  %183 = vadd.xlane.f32.xlu0 %v177
  %v184 = vpop.xlane.xlu0 %183
  %185 = vadd.xlane.f32.xlu0 %v178
  %v186 = vpop.xlane.xlu0 %185
  %v187 = vmul.f32 %v180, %v166
  %v188 = vmul.f32 %v182, %v166
  %v189 = vmul.f32 %v184, %v166
  %v190 = vmul.f32 %v186, %v166
  %v191 = vadd.f32 %v187, 1e-12
  %v192 = vadd.f32 %v188, 1e-12
  %v193 = vadd.f32 %v189, 1e-12
  %v194 = vadd.f32 %v190, 1e-12
  %v195 = vrsqrt.pop %v191
  %v196 = vrsqrt.pop %v192
  %v197 = vrsqrt.pop %v193
  %v198 = vrsqrt.pop %v194
  %v199 = vmul.f32 %v171, %v195
  %v200 = vmul.f32 %v172, %v196
  %v201 = vmul.f32 %v173, %v197
  %v202 = vmul.f32 %v174, %v198
  %v203 = vld [vmem:[%s4] sm:$0x1]
  %v205 = vlaneseq
  %v206 = vshrl.u32 %v205, 7
  %v207 = vsub.s32 0, %v206
  %v208 = vrot.slane %v203, %v207
  %v210 = vmul.f32 %v199, %v208
  %v211 = vmul.f32 %v200, %v208
  %v212 = vmul.f32 %v201, %v208
  %v213 = vmul.f32 %v202, %v208
  %v214 = vld [vmem:[%s5] sm:$0x1]
  %v216 = vlaneseq
  %v217 = vshrl.u32 %v216, 7
  %v218 = vsub.s32 0, %v217
  %v219 = vrot.slane %v214, %v218
  %v221 = vadd.f32 %v210, %v219
  %v222 = vadd.f32 %v211, %v219
  %v223 = vadd.f32 %v212, %v219
  %v224 = vadd.f32 %v213, %v219
  %225 = vst [vmem:[%s6] sm:$0xff] %v221
  %226 = vst [vmem:[%s6 + $0x8] sm:$0xff] %v222
  %227 = vst [vmem:[%s6 + $0x10] sm:$0xff] %v223
  %228 = vst [vmem:[%s6 + $0x18] sm:$0xff] %v224
  // Predicated region
  $region26: #{bert_attention.5} parent=0 // pred_check
    _
  $region27: #{bert_attention.5} parent=0 // pred_check_branch
    %230 = sbr.rel (0) target = $region29
  $region28: #{bert_attention.5} parent=0 // pred_region
    _
  $region29: #{bert_attention.5} parent=0 // pred_fallthru
    _
  // Predicated region
  $region30: #{bert_attention.5} parent=0 // pred_check
    _
  $region31: #{bert_attention.5} parent=0 // pred_check_branch
    %232 = sbr.rel (0) target = $region33
  $region32: #{bert_attention.5} parent=0 // pred_region
    _
  $region33: #{bert_attention.5} parent=0 // pred_fallthru
    _

// kernel: bert_attention.4
$region0: #{bert_attention.4}
  #allocation0 [shape = 'u32[]', space=smem, size = 0x4, offset = 0x4, fixed_abs, tag = 'smem constant byte address 0x4 - core index']
  #allocation1 [shape = 'u32[144,128]{1,0:T(1,128)}', space=vmem, size = 0x12000, scoped, tag = 'internal scratch']
  %s0 = inlined_call_operand.vmem [shape: f32[2,16,384], index: 0, kind: input, shape index: {}]
  %s1 = inlined_call_operand.vmem [shape: f32[2,1,16], index: 1, kind: input, shape index: {}]
  %s2 = inlined_call_operand.vmem [shape: f32[2,16,128], index: 2, kind: output, shape index: {}]
  %s3 = sld [smem:[#allocation0]]
  $region41: #{bert_attention.4} parent=0
    _
  %s5 = ssub.s32 1, %s3
  %s6 = scalar_select 0, %s5, %s3
  loop: start=0, step=1, limit=4
  $region2: #{bert_attention.4} parent=0 // loop_pre_header
    _
  $region3: #{bert_attention.4} parent=0 // loop_header
    %s8 = sphi 0, %s12
    %p9 = scmp.ge.s32.totalorder %s8, 4
    %s18 = sphi 0, %s20
    %s21 = sphi 0, %s18
    %s22 = sphi 0, %s21
    %s38 = sphi 0, %s22
    %s44 = sphi 0, %s46
    %s47 = sphi 0, %s44
    %s48 = sphi 0, %s47
    %s64 = sphi 0, %s48
    %s70 = sphi 0, %s72
    %s73 = sphi 0, %s70
    %s74 = sphi 0, %s73
    %s90 = sphi 0, %s74
  $region4: #{bert_attention.4} parent=0 // loop_header_branch
    %11 = sbr.rel (%p9) target = $region8
  $region5: #{bert_attention.4} parent=0 // loop_body
    %s13 = ssub.s32 %s8, 1
    %s14 = ssub.s32 %s8, 2
    %s15 = sadd.s32 %s8, 1
    %s16 = ssub.s32 %s8, %s15
    %p17 = scmp.eq.s32.totalorder %s16, 0
    %s19 = sadd.s32 %s18, 1
    %s20 = scalar_select %p17, %s18, %s19
    %p23 = pneg %p17
    %p24 = scmp.eq.s32.totalorder %s8, 1
    %p25 = por %p23, %p24
    %p26 = scmp.ne.s32.totalorder %s18, %s21
    %p27 = scmp.eq.s32.totalorder %s8, 0
    %p28 = por %p26, %p27
    %p29 = scmp.ne.s32.totalorder %s18, %s21
    %p30 = scmp.eq.s32.totalorder %s13, 1
    %p31 = por %p29, %p30
    %p32 = scmp.ne.s32.totalorder %s21, %s22
    %p33 = scmp.eq.s32.totalorder %s13, 0
    %p34 = por %p32, %p33
    %p35 = scmp.ne.s32.totalorder %s21, %s22
    %p36 = scmp.eq.s32.totalorder %s14, 1
    %p37 = por %p35, %p36
    %p39 = scmp.ne.s32.totalorder %s22, %s38
    %p40 = scmp.eq.s32.totalorder %s14, 0
    %p41 = por %p39, %p40
    %s42 = ssub.s32 %s8, %s15
    %p43 = scmp.eq.s32.totalorder %s42, 0
    %s45 = sadd.s32 %s44, 1
    %s46 = scalar_select %p43, %s44, %s45
    %p49 = pneg %p43
    %p50 = scmp.eq.s32.totalorder %s8, 1
    %p51 = por %p49, %p50
    %p52 = scmp.ne.s32.totalorder %s44, %s47
    %p53 = scmp.eq.s32.totalorder %s8, 0
    %p54 = por %p52, %p53
    %p55 = scmp.ne.s32.totalorder %s44, %s47
    %p56 = scmp.eq.s32.totalorder %s13, 1
    %p57 = por %p55, %p56
    %p58 = scmp.ne.s32.totalorder %s47, %s48
    %p59 = scmp.eq.s32.totalorder %s13, 0
    %p60 = por %p58, %p59
    %p61 = scmp.ne.s32.totalorder %s47, %s48
    %p62 = scmp.eq.s32.totalorder %s14, 1
    %p63 = por %p61, %p62
    %p65 = scmp.ne.s32.totalorder %s48, %s64
    %p66 = scmp.eq.s32.totalorder %s14, 0
    %p67 = por %p65, %p66
    %s68 = ssub.s32 %s8, %s15
    %p69 = scmp.eq.s32.totalorder %s68, 0
    %s71 = sadd.s32 %s70, 1
    %s72 = scalar_select %p69, %s70, %s71
    %p75 = pneg %p69
    %p76 = scmp.eq.s32.totalorder %s8, 1
    %p77 = por %p75, %p76
    %p78 = scmp.ne.s32.totalorder %s70, %s73
    %p79 = scmp.eq.s32.totalorder %s8, 0
    %p80 = por %p78, %p79
    %p81 = scmp.ne.s32.totalorder %s70, %s73
    %p82 = scmp.eq.s32.totalorder %s13, 1
    %p83 = por %p81, %p82
    %p84 = scmp.ne.s32.totalorder %s73, %s74
    %p85 = scmp.eq.s32.totalorder %s13, 0
    %p86 = por %p84, %p85
    %p87 = scmp.ne.s32.totalorder %s73, %s74
    %p88 = scmp.eq.s32.totalorder %s14, 1
    %p89 = por %p87, %p88
    %p91 = scmp.ne.s32.totalorder %s74, %s90
    %p92 = scmp.eq.s32.totalorder %s14, 0
    %p93 = por %p91, %p92
    %p94 = scmp.le.s32.totalorder 1, %s8
    %p95 = scmp.lt.s32.totalorder %s8, 3
    %p96 = pnand %p94, %p95
    %p97 = pneg %p96
    // Predicated region
    $region9: #{bert_attention.4} parent=5 // pred_check
      _
    $region10: #{bert_attention.4} parent=5 // pred_check_branch
      %99 = sbr.rel (%p96) target = $region12
    $region11: #{bert_attention.4} parent=5 // pred_region
      %s100 = ssub.s32 %s8, 1
    $region12: #{bert_attention.4} parent=5 // pred_fallthru
      _
    %p101 = scmp.lt.s32.totalorder %s8, 2
    // Predicated region
    $region13: #{bert_attention.4} parent=5 // pred_check
      %p102 = pneg %p101
    $region14: #{bert_attention.4} parent=5 // pred_check_branch
      %104 = sbr.rel (%p102) target = $region16
    $region15: #{bert_attention.4} parent=5 // pred_region
      // Predicated region
      $region17: #{bert_attention.4} parent=15 // pred_check
        %p105 = pneg %p28
      $region18: #{bert_attention.4} parent=15 // pred_check_branch
        %107 = sbr.rel (%p105) target = $region20
      $region19: #{bert_attention.4} parent=15 // pred_region
        %p108 = scmp.lt.s32.totalorder %s8, 1
        %s109 = scalar_select %p108, %s8, 1
        %s110 = smul.addr %s109, 6
        %s111 = smul.addr %s110, 8
        %s112 = scalar_lea.vmem %s0, %s111
      $region20: #{bert_attention.4} parent=15 // pred_fallthru
        _
      // Predicated region
      $region21: #{bert_attention.4} parent=15 // pred_check
        %p113 = pneg %p54
      $region22: #{bert_attention.4} parent=15 // pred_check_branch
        %115 = sbr.rel (%p113) target = $region24
      $region23: #{bert_attention.4} parent=15 // pred_region
        %p116 = scmp.lt.s32.totalorder %s8, 1
        %s117 = scalar_select %p116, %s8, 1
        %s118 = scalar_lea.vmem %s1, %s117
      $region24: #{bert_attention.4} parent=15 // pred_fallthru
        _
    $region16: #{bert_attention.4} parent=5 // pred_fallthru
      _
    %p119 = scmp.le.s32.totalorder 1, %s8
    %p120 = scmp.lt.s32.totalorder %s8, 3
    %p121 = pnand %p119, %p120
    %p122 = pneg %p121
    // Predicated region
    $region25: #{bert_attention.4} parent=5 // pred_check
      _
    $region26: #{bert_attention.4} parent=5 // pred_check_branch
      %124 = sbr.rel (%p121) target = $region28
    $region27: #{bert_attention.4} parent=5 // pred_region
      %s125 = ssub.s32 %s8, 1
      %p126 = scmp.lt.s32.totalorder %s13, 1
      %s127 = scalar_select %p126, %s13, 1
      %s128 = smul.addr %s127, 6
      %s129 = smul.addr %s128, 8
      %s130 = scalar_lea.vmem %s0, %s129
      %p131 = pneg %p34
      %p132 = pneg %p31
      %p133 = scmp.lt.s32.totalorder %s13, 1
      %s134 = scalar_select %p133, %s13, 1
      %s135 = scalar_lea.vmem %s1, %s134
      %p136 = pneg %p60
      %p137 = pneg %p57
      %p138 = pneg %p86
      %p139 = pneg %p83
      %p140 = scmp.lt.s32.totalorder %s13, 1
      %s141 = scalar_select %p140, %s13, 1
      %s142 = smul.addr %s141, 2
      %s143 = smul.addr %s142, 8
      %s144 = scalar_lea.vmem %s2, %s143
      %p145 = scmp.lt.s32.totalorder %s13, 1
      %s146 = scalar_select %p145, %s13, 1
      %s147 = smul.addr %s146, 6
      %s148 = smul.addr %s147, 8
      %s149 = scalar_lea.vmem %s0, %s148
      %p150 = scmp.lt.s32.totalorder %s13, 1
      %s151 = scalar_select %p150, %s13, 1
      %s152 = scalar_lea.vmem %s1, %s151
      %p153 = scmp.lt.s32.totalorder %s13, 1
      %s154 = scalar_select %p153, %s13, 1
      %s155 = smul.addr %s154, 2
      %s156 = smul.addr %s155, 8
      %s157 = scalar_lea.vmem %s2, %s156
      %v159 = vld [vmem:[%s152] sm:$0x1]
      %v160 = vld [vmem:[%s149] sm:$0xff]
      %v161 = vld [vmem:[%s149 + $0x18] sm:$0xff]
      %v162 = vpack.c.bf16 %v161, %v160
      %v163 = vld [vmem:[%s149 + $0x8] sm:$0xff]
      %v164 = vld [vmem:[%s149 + $0x20] sm:$0xff]
      %v165 = vpack.c.bf16 %v164, %v163
      %v166 = vld [vmem:[%s149 + $0x10] sm:$0xff]
      %v167 = vld [vmem:[%s149 + $0x28] sm:$0xff]
      %v168 = vpack.c.bf16 %v167, %v166
      %vm169 = vcmask 523264
      %v171 = vsel %vm169, %v162, 0
      %v174 = vsel %vm169, %v165, 0
      %176 = vmatprep.subr.bf16.mxu0 0
      %177 = vmatpush1.bf16.xpose.msra.mxu0 %v174
      %178 = vmatprep.subr.bf16.mxu0 0
      %179 = vmatpush1.bf16.xpose.msra.mxu0 0
      %180 = vmatprep.subr.bf16.mxu0 0
      %181 = vmatpush1.bf16.xpose.msra.mxu0 0
      %182 = vmatprep.subr.bf16.mxu0 0
      %183 = vmatpush1.bf16.xpose.msra.mxu0 0
      %184 = vmatprep.subr.bf16.mxu0 0
      %185 = vmatpush1.bf16.xpose.msra.mxu0 0
      %186 = vmatprep.subr.bf16.mxu0 0
      %187 = vmatpush1.bf16.xpose.msra.mxu0 0
      %188 = vmatprep.subr.bf16.mxu0 0
      %189 = vmatpush1.bf16.xpose.msra.mxu0 0
      %190 = vmatprep.subr.bf16.mxu0 0
      %191 = vmatpush1.bf16.xpose.msra.mxu0 0
      %192 = vmatprep.subr.bf16.mxu0 0
      %193 = vmatpush1.bf16.xpose.msra.mxu0 0
      %194 = vmatprep.subr.bf16.mxu0 0
      %195 = vmatpush1.bf16.xpose.msra.mxu0 0
      %196 = vmatprep.subr.bf16.mxu0 0
      %197 = vmatpush1.bf16.xpose.msra.mxu0 0
      %198 = vmatprep.subr.bf16.mxu0 0
      %199 = vmatpush1.bf16.xpose.msra.mxu0 0
      %200 = vmatprep.subr.bf16.mxu0 0
      %201 = vmatpush1.bf16.xpose.msra.mxu0 0
      %202 = vmatprep.subr.bf16.mxu0 0
      %203 = vmatpush1.bf16.xpose.msra.mxu0 0
      %204 = vmatprep.subr.bf16.mxu0 0
      %205 = vmatpush1.bf16.xpose.msra.mxu0 0
      %206 = vmatprep.subr.bf16.mxu0 0
      %207 = vmatpush1.bf16.xpose.msra.mxu0 0
      %208 = vmatprep.mubr.bf16.mxu0 0
      %209 = vmatmul.mubr.bf16.gmra.mrb[0].mxu0 %v171
      %v210 = vpop.f32.mrb[0].mxu0
      %v211 = vadd.f32 0.0, %v210
      %v212 = vpop.f32.mrb[0].mxu0
      %v213 = vpop.f32.mrb[0].mxu0
      %v214 = vadd.f32 0.0, %v213
      %v215 = vpop.f32.mrb[0].mxu0
      %216 = vdwg.mxu0
      %v217 = vmul.f32 %v211, 0.125
      %v218 = vmul.f32 %v214, 0.125
      %v220 = vlaneseq
      %v221 = vshrl.u32 %v220, 7
      %v222 = vsub.s32 0, %v221
      %v223 = vrot.slane %v159, %v222
      %v225 = vadd.f32 %v217, %v223
      %v226 = vadd.f32 %v218, %v223
      %vm227 = vcmask 130048
      %v228 = vsel %vm227, %v225, -inf
      %229 = vmax.xlane.f32.xlu0 %v228
      %v230 = vpop.xlane.xlu0 %229
      %v231 = vsel %vm227, %v226, -inf
      %232 = vmax.xlane.f32.xlu0 %v231
      %v233 = vpop.xlane.xlu0 %232
      %v234 = vsub.f32 %v225, %v230
      %v235 = vsub.f32 %v226, %v233
      %v236 = vmul.f32 %v234, 1.442695
      %v237 = vpow.pop %v236
      %v238 = vmul.f32 %v235, 1.442695
      %v239 = vpow.pop %v238
      %v240 = vsel %vm227, %v237, 0.0
      %241 = vadd.xlane.f32.xlu0 %v240
      %v242 = vpop.xlane.xlu0 %241
      %v243 = vsel %vm227, %v239, 0.0
      %244 = vadd.xlane.f32.xlu0 %v243
      %v245 = vpop.xlane.xlu0 %244
      %v246 = vrcp.pop %v242
      %v247 = vrcp.pop %v245
      %v248 = vmul.f32 %v237, %v246
      %v249 = vmul.f32 %v239, %v247
      %v250 = vpack.c.bf16 %v249, %v248
      %v252 = vsel %vm227, %v250, 0
      %254 = vmatprep.subr.bf16.mxu0 0
      %255 = vmatpush1.bf16.msra.mxu0 %v168
      %256 = vmatprep.subr.bf16.mxu0 0
      %257 = vmatpush1.bf16.msra.mxu0 0
      %258 = vmatprep.subr.bf16.mxu0 0
      %259 = vmatpush1.bf16.msra.mxu0 0
      %260 = vmatprep.subr.bf16.mxu0 0
      %261 = vmatpush1.bf16.msra.mxu0 0
      %262 = vmatprep.subr.bf16.mxu0 0
      %263 = vmatpush1.bf16.msra.mxu0 0
      %264 = vmatprep.subr.bf16.mxu0 0
      %265 = vmatpush1.bf16.msra.mxu0 0
      %266 = vmatprep.subr.bf16.mxu0 0
      %267 = vmatpush1.bf16.msra.mxu0 0
      %268 = vmatprep.subr.bf16.mxu0 0
      %269 = vmatpush1.bf16.msra.mxu0 0
      %270 = vmatprep.subr.bf16.mxu0 0
      %271 = vmatpush1.bf16.msra.mxu0 0
      %272 = vmatprep.subr.bf16.mxu0 0
      %273 = vmatpush1.bf16.msra.mxu0 0
      %274 = vmatprep.subr.bf16.mxu0 0
      %275 = vmatpush1.bf16.msra.mxu0 0
      %276 = vmatprep.subr.bf16.mxu0 0
      %277 = vmatpush1.bf16.msra.mxu0 0
      %278 = vmatprep.subr.bf16.mxu0 0
      %279 = vmatpush1.bf16.msra.mxu0 0
      %280 = vmatprep.subr.bf16.mxu0 0
      %281 = vmatpush1.bf16.msra.mxu0 0
      %282 = vmatprep.subr.bf16.mxu0 0
      %283 = vmatpush1.bf16.msra.mxu0 0
      %284 = vmatprep.subr.bf16.mxu0 0
      %285 = vmatpush1.bf16.msra.mxu0 0
      %286 = vmatprep.mubr.bf16.mxu0 0
      %287 = vmatmul.mubr.bf16.gmra.mrb[0].mxu0 %v252
      %v288 = vpop.f32.mrb[0].mxu0
      %v289 = vadd.f32 0.0, %v288
      %v290 = vpop.f32.mrb[0].mxu0
      %v291 = vpop.f32.mrb[0].mxu0
      %v292 = vadd.f32 0.0, %v291
      %v293 = vpop.f32.mrb[0].mxu0
      %294 = vdwg.mxu0
      %295 = vst.msk [vmem:[%s157] sm:$0xff] %vm169, %v289
      %296 = vst.msk [vmem:[%s157 + $0x8] sm:$0xff] %vm169, %v292
      %v297 = vld [vmem:[%s149] sm:$0xff]
      %v298 = vld [vmem:[%s149 + $0x18] sm:$0xff]
      %v299 = vpack.c.bf16 %v298, %v297
      %v300 = vld [vmem:[%s149 + $0x8] sm:$0xff]
      %v301 = vld [vmem:[%s149 + $0x20] sm:$0xff]
      %v302 = vpack.c.bf16 %v301, %v300
      %v303 = vld [vmem:[%s149 + $0x10] sm:$0xff]
      %v304 = vld [vmem:[%s149 + $0x28] sm:$0xff]
      %v305 = vpack.c.bf16 %v304, %v303
      %307 = vrot.lane.b32.xlu0 %v299, 64
      %v308 = vpop.permute.xlu0 %307
      %310 = vrot.lane.b32.xlu0 %v302, 64
      %v311 = vpop.permute.xlu0 %310
      %v313 = vsel %vm169, %v308, 0
      %v316 = vsel %vm169, %v311, 0
      %318 = vmatprep.subr.bf16.mxu0 0
      %319 = vmatpush1.bf16.xpose.msra.mxu0 %v316
      %320 = vmatprep.subr.bf16.mxu0 0
      %321 = vmatpush1.bf16.xpose.msra.mxu0 0
      %322 = vmatprep.subr.bf16.mxu0 0
      %323 = vmatpush1.bf16.xpose.msra.mxu0 0
      %324 = vmatprep.subr.bf16.mxu0 0
      %325 = vmatpush1.bf16.xpose.msra.mxu0 0
      %326 = vmatprep.subr.bf16.mxu0 0
      %327 = vmatpush1.bf16.xpose.msra.mxu0 0
      %328 = vmatprep.subr.bf16.mxu0 0
      %329 = vmatpush1.bf16.xpose.msra.mxu0 0
      %330 = vmatprep.subr.bf16.mxu0 0
      %331 = vmatpush1.bf16.xpose.msra.mxu0 0
      %332 = vmatprep.subr.bf16.mxu0 0
      %333 = vmatpush1.bf16.xpose.msra.mxu0 0
      %334 = vmatprep.subr.bf16.mxu0 0
      %335 = vmatpush1.bf16.xpose.msra.mxu0 0
      %336 = vmatprep.subr.bf16.mxu0 0
      %337 = vmatpush1.bf16.xpose.msra.mxu0 0
      %338 = vmatprep.subr.bf16.mxu0 0
      %339 = vmatpush1.bf16.xpose.msra.mxu0 0
      %340 = vmatprep.subr.bf16.mxu0 0
      %341 = vmatpush1.bf16.xpose.msra.mxu0 0
      %342 = vmatprep.subr.bf16.mxu0 0
      %343 = vmatpush1.bf16.xpose.msra.mxu0 0
      %344 = vmatprep.subr.bf16.mxu0 0
      %345 = vmatpush1.bf16.xpose.msra.mxu0 0
      %346 = vmatprep.subr.bf16.mxu0 0
      %347 = vmatpush1.bf16.xpose.msra.mxu0 0
      %348 = vmatprep.subr.bf16.mxu0 0
      %349 = vmatpush1.bf16.xpose.msra.mxu0 0
      %350 = vmatprep.mubr.bf16.mxu0 0
      %351 = vmatmul.mubr.bf16.gmra.mrb[0].mxu0 %v313
      %v352 = vpop.f32.mrb[0].mxu0
      %v353 = vadd.f32 0.0, %v352
      %v354 = vpop.f32.mrb[0].mxu0
      %v355 = vpop.f32.mrb[0].mxu0
      %v356 = vadd.f32 0.0, %v355
      %v357 = vpop.f32.mrb[0].mxu0
      %358 = vdwg.mxu0
      %v359 = vmul.f32 %v353, 0.125
      %v360 = vmul.f32 %v356, 0.125
      %v361 = vadd.f32 %v359, %v223
      %v362 = vadd.f32 %v360, %v223
      %v363 = vsel %vm227, %v361, -inf
      %364 = vmax.xlane.f32.xlu0 %v363
      %v365 = vpop.xlane.xlu0 %364
      %v366 = vsel %vm227, %v362, -inf
      %367 = vmax.xlane.f32.xlu0 %v366
      %v368 = vpop.xlane.xlu0 %367
      %v369 = vsub.f32 %v361, %v365
      %v370 = vsub.f32 %v362, %v368
      %v371 = vmul.f32 %v369, 1.442695
      %v372 = vpow.pop %v371
      %v373 = vmul.f32 %v370, 1.442695
      %v374 = vpow.pop %v373
      %v375 = vsel %vm227, %v372, 0.0
      %376 = vadd.xlane.f32.xlu0 %v375
      %v377 = vpop.xlane.xlu0 %376
      %v378 = vsel %vm227, %v374, 0.0
      %379 = vadd.xlane.f32.xlu0 %v378
      %v380 = vpop.xlane.xlu0 %379
      %v381 = vrcp.pop %v377
      %v382 = vrcp.pop %v380
      %v383 = vmul.f32 %v372, %v381
      %v384 = vmul.f32 %v374, %v382
      %v385 = vpack.c.bf16 %v384, %v383
      %387 = vrot.lane.b32.xlu0 %v305, 64
      %v388 = vpop.permute.xlu0 %387
      %v391 = vsel %vm227, %v385, 0
      %393 = vmatprep.subr.bf16.mxu0 0
      %394 = vmatpush1.bf16.msra.mxu0 %v388
      %395 = vmatprep.subr.bf16.mxu0 0
      %396 = vmatpush1.bf16.msra.mxu0 0
      %397 = vmatprep.subr.bf16.mxu0 0
      %398 = vmatpush1.bf16.msra.mxu0 0
      %399 = vmatprep.subr.bf16.mxu0 0
      %400 = vmatpush1.bf16.msra.mxu0 0
      %401 = vmatprep.subr.bf16.mxu0 0
      %402 = vmatpush1.bf16.msra.mxu0 0
      %403 = vmatprep.subr.bf16.mxu0 0
      %404 = vmatpush1.bf16.msra.mxu0 0
      %405 = vmatprep.subr.bf16.mxu0 0
      %406 = vmatpush1.bf16.msra.mxu0 0
      %407 = vmatprep.subr.bf16.mxu0 0
      %408 = vmatpush1.bf16.msra.mxu0 0
      %409 = vmatprep.subr.bf16.mxu0 0
      %410 = vmatpush1.bf16.msra.mxu0 0
      %411 = vmatprep.subr.bf16.mxu0 0
      %412 = vmatpush1.bf16.msra.mxu0 0
      %413 = vmatprep.subr.bf16.mxu0 0
      %414 = vmatpush1.bf16.msra.mxu0 0
      %415 = vmatprep.subr.bf16.mxu0 0
      %416 = vmatpush1.bf16.msra.mxu0 0
      %417 = vmatprep.subr.bf16.mxu0 0
      %418 = vmatpush1.bf16.msra.mxu0 0
      %419 = vmatprep.subr.bf16.mxu0 0
      %420 = vmatpush1.bf16.msra.mxu0 0
      %421 = vmatprep.subr.bf16.mxu0 0
      %422 = vmatpush1.bf16.msra.mxu0 0
      %423 = vmatprep.subr.bf16.mxu0 0
      %424 = vmatpush1.bf16.msra.mxu0 0
      %425 = vmatprep.mubr.bf16.mxu0 0
      %426 = vmatmul.mubr.bf16.gmra.mrb[0].mxu0 %v391
      %v427 = vpop.f32.mrb[0].mxu0
      %v428 = vadd.f32 0.0, %v427
      %v429 = vpop.f32.mrb[0].mxu0
      %v430 = vpop.f32.mrb[0].mxu0
      %v431 = vadd.f32 0.0, %v430
      %v432 = vpop.f32.mrb[0].mxu0
      %433 = vdwg.mxu0
      %436 = vrot.lane.b32.xlu0 %v428, 64
      %v437 = vpop.permute.xlu0 %436
      %438 = vrot.lane.b32.xlu0 %v431, 64
      %v439 = vpop.permute.xlu0 %438
      %vm442 = vcmask 1048064
      %443 = vst.msk [vmem:[%s157] sm:$0xff] %vm442, %v437
      %444 = vst.msk [vmem:[%s157 + $0x8] sm:$0xff] %vm442, %v439
      %p445 = scmp.lt.s32.totalorder %s13, 1
      %s446 = scalar_select %p445, %s13, 1
      %s447 = smul.addr %s446, 2
      %s448 = smul.addr %s447, 8
      %s449 = scalar_lea.vmem %s2, %s448
      // Predicated region
      $region29: #{bert_attention.4} parent=27 // pred_check
        %p450 = pneg %p83
      $region30: #{bert_attention.4} parent=27 // pred_check_branch
        %452 = sbr.rel (%p450) target = $region32
      $region31: #{bert_attention.4} parent=27 // pred_region
        _
      $region32: #{bert_attention.4} parent=27 // pred_fallthru
        _
    $region28: #{bert_attention.4} parent=5 // pred_fallthru
      _
    %p453 = scmp.le.s32.totalorder 2, %s8
    // Predicated region
    $region33: #{bert_attention.4} parent=5 // pred_check
      %p454 = pneg %p453
    $region34: #{bert_attention.4} parent=5 // pred_check_branch
      %456 = sbr.rel (%p454) target = $region36
    $region35: #{bert_attention.4} parent=5 // pred_region
      %s457 = ssub.s32 %s8, 2
      // Predicated region
      $region37: #{bert_attention.4} parent=35 // pred_check
        %p458 = pneg %p89
      $region38: #{bert_attention.4} parent=35 // pred_check_branch
        %460 = sbr.rel (%p458) target = $region40
      $region39: #{bert_attention.4} parent=35 // pred_region
        %p461 = scmp.lt.s32.totalorder %s14, 1
        %s462 = scalar_select %p461, %s14, 1
        %s463 = smul.addr %s462, 2
        %s464 = smul.addr %s463, 8
        %s465 = scalar_lea.vmem %s2, %s464
      $region40: #{bert_attention.4} parent=35 // pred_fallthru
        _
    $region36: #{bert_attention.4} parent=5 // pred_fallthru
      _
  $region6: #{bert_attention.4} parent=0 // loop_footer
    %s12 = sadd.s32 1, %s8
  $region7: #{bert_attention.4} parent=0 // loop_footer_branch
    %7 = sbr.rel target = $region3
  $region8: #{bert_attention.4} parent=0 // loop_exit
    _

// kernel: bert_attention.3
$region0: #{bert_attention.3}
  #allocation0 [shape = 'u32[]', space=smem, size = 0x4, offset = 0x4, fixed_abs, tag = 'smem constant byte address 0x4 - core index']
  #allocation1 [shape = 'u32[144,128]{1,0:T(1,128)}', space=vmem, size = 0x12000, scoped, tag = 'internal scratch']
  %s0 = inlined_call_operand.vmem [shape: f32[32,128], index: 0, kind: input, shape index: {}]
  %s1 = inlined_call_operand.vmem [shape: bf16[128,384], index: 1, kind: input, shape index: {}]
  %s2 = inlined_call_operand.vmem [shape: f32[1,384], index: 2, kind: input, shape index: {}]
  %s3 = inlined_call_operand.vmem [shape: f32[32,384], index: 3, kind: output, shape index: {}]
  %s4 = sld [smem:[#allocation0]]
  $region22: #{bert_attention.3} parent=0
    _
  %s6 = ssub.s32 1, %s4
  %s7 = scalar_select 0, %s6, %s4
  // Predicated region
  $region2: #{bert_attention.3} parent=0 // pred_check
    _
  $region3: #{bert_attention.3} parent=0 // pred_check_branch
    %9 = sbr.rel (0) target = $region5
  $region4: #{bert_attention.3} parent=0 // pred_region
    _
  $region5: #{bert_attention.3} parent=0 // pred_fallthru
    _
  // Predicated region
  $region6: #{bert_attention.3} parent=0 // pred_check
    _
  $region7: #{bert_attention.3} parent=0 // pred_check_branch
    %11 = sbr.rel (0) target = $region9
  $region8: #{bert_attention.3} parent=0 // pred_region
    _
  $region9: #{bert_attention.3} parent=0 // pred_fallthru
    _
  // Predicated region
  $region10: #{bert_attention.3} parent=0 // pred_check
    _
  $region11: #{bert_attention.3} parent=0 // pred_check_branch
    %13 = sbr.rel (0) target = $region13
  $region12: #{bert_attention.3} parent=0 // pred_region
    _
  $region13: #{bert_attention.3} parent=0 // pred_fallthru
    _
  %v15 = vld [vmem:[%s0] sm:$0xff]
  %v16 = vld [vmem:[%s0 + $0x8] sm:$0xff]
  %v17 = vld [vmem:[%s0 + $0x10] sm:$0xff]
  %v18 = vld [vmem:[%s0 + $0x18] sm:$0xff]
  %v19 = vpack.c.bf16 %v16, %v15
  %v20 = vpack.c.bf16 %v18, %v17
  %v21 = vld [vmem:[%s1] sm:$0xff]
  %v22 = vld [vmem:[%s1 + $0x8] sm:$0xf]
  %v23 = vld [vmem:[%s1 + $0xc] sm:$0xff]
  %v24 = vld [vmem:[%s1 + $0x14] sm:$0xf]
  %v25 = vld [vmem:[%s1 + $0x18] sm:$0xff]
  %v26 = vld [vmem:[%s1 + $0x20] sm:$0xf]
  %v27 = vld [vmem:[%s1 + $0x24] sm:$0xff]
  %v28 = vld [vmem:[%s1 + $0x2c] sm:$0xf]
  %v29 = vld [vmem:[%s1 + $0x30] sm:$0xff]
  %v30 = vld [vmem:[%s1 + $0x38] sm:$0xf]
  %v31 = vld [vmem:[%s1 + $0x3c] sm:$0xff]
  %v32 = vld [vmem:[%s1 + $0x44] sm:$0xf]
  %v33 = vld [vmem:[%s1 + $0x48] sm:$0xff]
  %v34 = vld [vmem:[%s1 + $0x50] sm:$0xf]
  %v35 = vld [vmem:[%s1 + $0x54] sm:$0xff]
  %v36 = vld [vmem:[%s1 + $0x5c] sm:$0xf]
  %v37 = vld [vmem:[%s1 + $0x60] sm:$0xff]
  %v38 = vld [vmem:[%s1 + $0x68] sm:$0xf]
  %v39 = vld [vmem:[%s1 + $0x6c] sm:$0xff]
  %v40 = vld [vmem:[%s1 + $0x74] sm:$0xf]
  %v41 = vld [vmem:[%s1 + $0x78] sm:$0xff]
  %v42 = vld [vmem:[%s1 + $0x80] sm:$0xf]
  %v43 = vld [vmem:[%s1 + $0x84] sm:$0xff]
  %v44 = vld [vmem:[%s1 + $0x8c] sm:$0xf]
  %v45 = vld [vmem:[%s1 + $0x90] sm:$0xff]
  %v46 = vld [vmem:[%s1 + $0x98] sm:$0xf]
  %v47 = vld [vmem:[%s1 + $0x9c] sm:$0xff]
  %v48 = vld [vmem:[%s1 + $0xa4] sm:$0xf]
  %v49 = vld [vmem:[%s1 + $0xa8] sm:$0xff]
  %v50 = vld [vmem:[%s1 + $0xb0] sm:$0xf]
  %v51 = vld [vmem:[%s1 + $0xb4] sm:$0xff]
  %v52 = vld [vmem:[%s1 + $0xbc] sm:$0xf]
  %v53 = vld [vmem:[%s2] sm:$0x7]
  %v55 = vlaneseq
  %v56 = vshrl.u32 %v55, 7
  %v57 = vsub.s32 0, %v56
  %v58 = vrot.slane %v53, %v57
  %v59 = vlaneseq
  %v60 = vshrl.u32 %v59, 7
  %v61 = vsub.s32 1, %v60
  %v62 = vrot.slane %v53, %v61
  %v63 = vlaneseq
  %v64 = vshrl.u32 %v63, 7
  %v65 = vsub.s32 2, %v64
  %v66 = vrot.slane %v53, %v65
  %v102 = vunpack.c.l.b16 %v21
  %v103 = vunpack.c.h.b16 %v21
  %v104 = vunpack.c.l.b16 %v22
  %v105 = vunpack.c.l.b16 %v23
  %v106 = vunpack.c.h.b16 %v23
  %v107 = vunpack.c.l.b16 %v24
  %v108 = vunpack.c.l.b16 %v25
  %v109 = vunpack.c.h.b16 %v25
  %v110 = vunpack.c.l.b16 %v26
  %v111 = vunpack.c.l.b16 %v27
  %v112 = vunpack.c.h.b16 %v27
  %v113 = vunpack.c.l.b16 %v28
  %v114 = vunpack.c.l.b16 %v29
  %v115 = vunpack.c.h.b16 %v29
  %v116 = vunpack.c.l.b16 %v30
  %v117 = vunpack.c.l.b16 %v31
  %v118 = vunpack.c.h.b16 %v31
  %v119 = vunpack.c.l.b16 %v32
  %v120 = vunpack.c.l.b16 %v33
  %v121 = vunpack.c.h.b16 %v33
  %v122 = vunpack.c.l.b16 %v34
  %v123 = vunpack.c.l.b16 %v35
  %v124 = vunpack.c.h.b16 %v35
  %v125 = vunpack.c.l.b16 %v36
  %v126 = vunpack.c.l.b16 %v37
  %v127 = vunpack.c.h.b16 %v37
  %v128 = vunpack.c.l.b16 %v38
  %v129 = vunpack.c.l.b16 %v39
  %v130 = vunpack.c.h.b16 %v39
  %v131 = vunpack.c.l.b16 %v40
  %v132 = vunpack.c.l.b16 %v41
  %v133 = vunpack.c.h.b16 %v41
  %v134 = vunpack.c.l.b16 %v42
  %v135 = vunpack.c.l.b16 %v43
  %v136 = vunpack.c.h.b16 %v43
  %v137 = vunpack.c.l.b16 %v44
  %v138 = vunpack.c.l.b16 %v45
  %v139 = vunpack.c.h.b16 %v45
  %v140 = vunpack.c.l.b16 %v46
  %v141 = vunpack.c.l.b16 %v47
  %v142 = vunpack.c.h.b16 %v47
  %v143 = vunpack.c.l.b16 %v48
  %v144 = vunpack.c.l.b16 %v49
  %v145 = vunpack.c.h.b16 %v49
  %v146 = vunpack.c.l.b16 %v50
  %v147 = vunpack.c.l.b16 %v51
  %v148 = vunpack.c.h.b16 %v51
  %v149 = vunpack.c.l.b16 %v52
  %v150 = vpack.c.b16 %v105, %v102
  %v151 = vpack.c.b16 %v106, %v103
  %v152 = vpack.c.b16 %v107, %v104
  %v153 = vpack.c.b16 %v111, %v108
  %v154 = vpack.c.b16 %v112, %v109
  %v155 = vpack.c.b16 %v113, %v110
  %v156 = vpack.c.b16 %v117, %v114
  %v157 = vpack.c.b16 %v118, %v115
  %v158 = vpack.c.b16 %v119, %v116
  %v159 = vpack.c.b16 %v123, %v120
  %v160 = vpack.c.b16 %v124, %v121
  %v161 = vpack.c.b16 %v125, %v122
  %v162 = vpack.c.b16 %v129, %v126
  %v163 = vpack.c.b16 %v130, %v127
  %v164 = vpack.c.b16 %v131, %v128
  %v165 = vpack.c.b16 %v135, %v132
  %v166 = vpack.c.b16 %v136, %v133
  %v167 = vpack.c.b16 %v137, %v134
  %v168 = vpack.c.b16 %v141, %v138
  %v169 = vpack.c.b16 %v142, %v139
  %v170 = vpack.c.b16 %v143, %v140
  %v171 = vpack.c.b16 %v147, %v144
  %v172 = vpack.c.b16 %v148, %v145
  %v173 = vpack.c.b16 %v149, %v146
  %198 = vmatprep.subr.bf16.mxu0 %v151
  %199 = vmatpush1.bf16.msra.mxu0 %v150
  %200 = vmatprep.subr.bf16.mxu0 %v154
  %201 = vmatpush1.bf16.msra.mxu0 %v153
  %202 = vmatprep.subr.bf16.mxu0 %v157
  %203 = vmatpush1.bf16.msra.mxu0 %v156
  %204 = vmatprep.subr.bf16.mxu0 %v160
  %205 = vmatpush1.bf16.msra.mxu0 %v159
  %206 = vmatprep.subr.bf16.mxu0 %v163
  %207 = vmatpush1.bf16.msra.mxu0 %v162
  %208 = vmatprep.subr.bf16.mxu0 %v166
  %209 = vmatpush1.bf16.msra.mxu0 %v165
  %210 = vmatprep.subr.bf16.mxu0 %v169
  %211 = vmatpush1.bf16.msra.mxu0 %v168
  %212 = vmatprep.subr.bf16.mxu0 %v172
  %213 = vmatpush1.bf16.msra.mxu0 %v171
  %214 = vmatprep.subr.bf16.mxu0 0
  %215 = vmatpush1.bf16.msra.mxu0 0
  %216 = vmatprep.subr.bf16.mxu0 0
  %217 = vmatpush1.bf16.msra.mxu0 0
  %218 = vmatprep.subr.bf16.mxu0 0
  %219 = vmatpush1.bf16.msra.mxu0 0
  %220 = vmatprep.subr.bf16.mxu0 0
  %221 = vmatpush1.bf16.msra.mxu0 0
  %222 = vmatprep.subr.bf16.mxu0 0
  %223 = vmatpush1.bf16.msra.mxu0 0
  %224 = vmatprep.subr.bf16.mxu0 0
  %225 = vmatpush1.bf16.msra.mxu0 0
  %226 = vmatprep.subr.bf16.mxu0 0
  %227 = vmatpush1.bf16.msra.mxu0 0
  %228 = vmatprep.subr.bf16.mxu0 0
  %229 = vmatpush1.bf16.msra.mxu0 0
  %230 = vmatprep.mubr.bf16.mxu0 0
  %231 = vmatmul.mubr.bf16.gmra.mrb[0].mxu0 %v19
  %v232 = vpop.f32.mrb[0].mxu0
  %v233 = vadd.f32 %v58, %v232
  %v234 = vpop.f32.mrb[0].mxu0
  %v235 = vadd.f32 %v62, %v234
  %v236 = vpop.f32.mrb[0].mxu0
  %v237 = vadd.f32 %v58, %v236
  %v238 = vpop.f32.mrb[0].mxu0
  %v239 = vadd.f32 %v62, %v238
  %240 = vmatprep.mubr.bf16.mxu0 0
  %241 = vmatmul.mubr.bf16.gmra.mrb[0].mxu0 %v20
  %v242 = vpop.f32.mrb[0].mxu0
  %v243 = vadd.f32 %v58, %v242
  %v244 = vpop.f32.mrb[0].mxu0
  %v245 = vadd.f32 %v62, %v244
  %v246 = vpop.f32.mrb[0].mxu0
  %v247 = vadd.f32 %v58, %v246
  %v248 = vpop.f32.mrb[0].mxu0
  %v249 = vadd.f32 %v62, %v248
  %250 = vdwg.mxu0
  %251 = vmatprep.subr.bf16.mxu0 0
  %252 = vmatpush1.bf16.msra.mxu0 %v152
  %253 = vmatprep.subr.bf16.mxu0 0
  %254 = vmatpush1.bf16.msra.mxu0 %v155
  %255 = vmatprep.subr.bf16.mxu0 0
  %256 = vmatpush1.bf16.msra.mxu0 %v158
  %257 = vmatprep.subr.bf16.mxu0 0
  %258 = vmatpush1.bf16.msra.mxu0 %v161
  %259 = vmatprep.subr.bf16.mxu0 0
  %260 = vmatpush1.bf16.msra.mxu0 %v164
  %261 = vmatprep.subr.bf16.mxu0 0
  %262 = vmatpush1.bf16.msra.mxu0 %v167
  %263 = vmatprep.subr.bf16.mxu0 0
  %264 = vmatpush1.bf16.msra.mxu0 %v170
  %265 = vmatprep.subr.bf16.mxu0 0
  %266 = vmatpush1.bf16.msra.mxu0 %v173
  %267 = vmatprep.subr.bf16.mxu0 0
  %268 = vmatpush1.bf16.msra.mxu0 0
  %269 = vmatprep.subr.bf16.mxu0 0
  %270 = vmatpush1.bf16.msra.mxu0 0
  %271 = vmatprep.subr.bf16.mxu0 0
  %272 = vmatpush1.bf16.msra.mxu0 0
  %273 = vmatprep.subr.bf16.mxu0 0
  %274 = vmatpush1.bf16.msra.mxu0 0
  %275 = vmatprep.subr.bf16.mxu0 0
  %276 = vmatpush1.bf16.msra.mxu0 0
  %277 = vmatprep.subr.bf16.mxu0 0
  %278 = vmatpush1.bf16.msra.mxu0 0
  %279 = vmatprep.subr.bf16.mxu0 0
  %280 = vmatpush1.bf16.msra.mxu0 0
  %281 = vmatprep.subr.bf16.mxu0 0
  %282 = vmatpush1.bf16.msra.mxu0 0
  %283 = vmatprep.mubr.bf16.mxu0 0
  %284 = vmatmul.mubr.bf16.gmra.mrb[0].mxu0 %v19
  %v285 = vpop.f32.mrb[0].mxu0
  %v286 = vadd.f32 %v66, %v285
  %v287 = vpop.f32.mrb[0].mxu0
  %v288 = vpop.f32.mrb[0].mxu0
  %v289 = vadd.f32 %v66, %v288
  %v290 = vpop.f32.mrb[0].mxu0
  %291 = vmatprep.mubr.bf16.mxu0 0
  %292 = vmatmul.mubr.bf16.gmra.mrb[0].mxu0 %v20
  %v293 = vpop.f32.mrb[0].mxu0
  %v294 = vadd.f32 %v66, %v293
  %v295 = vpop.f32.mrb[0].mxu0
  %v296 = vpop.f32.mrb[0].mxu0
  %v297 = vadd.f32 %v66, %v296
  %v298 = vpop.f32.mrb[0].mxu0
  %299 = vdwg.mxu0
  %300 = vst [vmem:[%s3] sm:$0xff] %v233
  %301 = vst [vmem:[%s3 + $0x8] sm:$0xff] %v235
  %302 = vst [vmem:[%s3 + $0x10] sm:$0xff] %v286
  %303 = vst [vmem:[%s3 + $0x18] sm:$0xff] %v237
  %304 = vst [vmem:[%s3 + $0x20] sm:$0xff] %v239
  %305 = vst [vmem:[%s3 + $0x28] sm:$0xff] %v289
  %306 = vst [vmem:[%s3 + $0x30] sm:$0xff] %v243
  %307 = vst [vmem:[%s3 + $0x38] sm:$0xff] %v245
  %308 = vst [vmem:[%s3 + $0x40] sm:$0xff] %v294
  %309 = vst [vmem:[%s3 + $0x48] sm:$0xff] %v247
  %310 = vst [vmem:[%s3 + $0x50] sm:$0xff] %v249
  %311 = vst [vmem:[%s3 + $0x58] sm:$0xff] %v297
  // Predicated region
  $region14: #{bert_attention.3} parent=0 // pred_check
    _
  $region15: #{bert_attention.3} parent=0 // pred_check_branch
    %313 = sbr.rel (0) target = $region17
  $region16: #{bert_attention.3} parent=0 // pred_region
    _
  $region17: #{bert_attention.3} parent=0 // pred_fallthru
    _
  // Predicated region
  $region18: #{bert_attention.3} parent=0 // pred_check
    _
  $region19: #{bert_attention.3} parent=0 // pred_check_branch
    %315 = sbr.rel (0) target = $region21
  $region20: #{bert_attention.3} parent=0 // pred_region
    _
  $region21: #{bert_attention.3} parent=0 // pred_fallthru
    _

</llo_original>
